<compile_context>
chip_gen: v7x
topology: tpu7x:2x2x1
jax: 0.10.0
libtpu: 0.0.40
codegen_flags: <defaults>
</compile_context>

<pallas_src>
import math
from dataclasses import dataclass
from typing import Any, Tuple

import numpy as np
import jax
import jax.numpy as jnp
from jax.experimental import pallas as pl
from jax.experimental.pallas import tpu as pltpu

_LANES = 128
_SUBLANES = 8
_CE_LANE = 127            # output lane holding the cross-entropy (batch sum)
_DUMMY_SEG = 126          # segment id for zero-padding sub-blocks
_MAX_PARAMS = 126         # lanes 0..125 hold per-parameter sum-of-squares
_QUANTUM_ROWS = 64        # per-parameter padding quantum: 64x128 = 32 KiB f32
_CE_FUSE_MAX_BYTES = 4 << 20   # keep logits resident in the fused kernel below this


# ---------------------------------------------------------------------------
# Hardware-dependent defaults (all defensively guarded; correctness never
# depends on the detection being right).
# ---------------------------------------------------------------------------
def _device_kind() -> str:
    try:
        return jax.devices()[0].device_kind.lower()
    except Exception:
        return ""


def _is_v7x() -> bool:
    return "v7" in _device_kind()


def _default_num_cores() -> int:
    # A "parallel" leading grid axis only helps on chips with >1 TensorCore
    # (v7x); on v5e/v6e a core split is a serial split, so default to the
    # real TensorCore count when discoverable, else 1.
    try:
        info = pltpu.get_tpu_info()
        for attr in ("num_tensorcores", "tensorcore_count", "num_cores",
                     "cores_per_chip", "num_cores_per_chip"):
            n = getattr(info, attr, None)
            if n is None:
                continue
            try:
                n = int(n)
            except Exception:
                continue
            if 1 <= n <= 8:
                return n
    except Exception:
        pass
    if _is_v7x():
        return 2
    return 1


def _default_tile_rows() -> int:
    # Pure HBM streaming: bigger blocks amortize the ~0.35 us/grid-step
    # overhead.  v7x (3.2 TB/s) wants 4096x128; v6e 2048; v5e 1024-2048.
    kind = _device_kind()
    if "v7" in kind:
        return 4096
    return 2048


def _round_up(x: int, m: int) -> int:
    return ((x + m - 1) // m) * m


# ---------------------------------------------------------------------------
# Step-invariant FedProx metadata (+ cached GLOBAL slab): build ONCE, reuse.
# ---------------------------------------------------------------------------
@dataclass
class ProxSpec:
    names: Tuple[str, ...]
    subs_per_param: Tuple[int, ...]
    slab_dtype: Any
    quantum_rows: int
    subs_per_block: int
    blocks_per_core: int
    num_cores: int
    total_subblocks: int
    flush_arr: Any            # i32[total_subblocks], -1 = no flush after sub-block
    global_slab: Any          # [rows, 128] in slab_dtype (constant across steps)


def _eligible_names(local_params, global_params):
    names = []
    for name, lp in local_params.items():
        if 'bn' in name:
            continue
        gp = global_params.get(name)
        if gp is None:
            continue
        if tuple(jnp.asarray(lp).shape) != tuple(jnp.asarray(gp).shape):
            # TODO(synk): PyTorch only logs the shape mismatch; nothing to compute.
            continue
        names.append(name)
    return names


def pack_slab(params, spec: ProxSpec):
    """Flatten + quantum-pad + concatenate eligible params into an [R,128]
    slab in spec.slab_dtype.  The global slab is packed once inside
    make_prox_spec; for the local model a training loop should ideally keep
    the parameters slab-resident instead of repacking every step.
    TODO(synk): zero-copy path when params are already stored in slab layout."""
    q_elems = spec.quantum_rows * _LANES
    pieces = []
    for name, nsub in zip(spec.names, spec.subs_per_param):
        flat = jnp.ravel(jnp.asarray(params[name])).astype(spec.slab_dtype)
        pad = nsub * q_elems - flat.shape[0]
        if pad:
            flat = jnp.pad(flat, (0, pad))
        pieces.append(flat)
    pad_subs = spec.total_subblocks - sum(spec.subs_per_param)
    if pad_subs:
        pieces.append(jnp.zeros((pad_subs * q_elems,), spec.slab_dtype))
    if not pieces:
        pieces.append(jnp.zeros((spec.total_subblocks * q_elems,), spec.slab_dtype))
    return jnp.concatenate(pieces).reshape(-1, _LANES)


def make_prox_spec(local_params, global_params, *, tile_rows=None,
                   num_cores=None, quantum_rows=_QUANTUM_ROWS) -> ProxSpec:
    assert quantum_rows % (2 * _SUBLANES) == 0   # bf16 (16,128) tiling safe
    names = _eligible_names(local_params, global_params)
    if len(names) > _MAX_PARAMS:
        raise ValueError(
            f"prox kernel supports at most {_MAX_PARAMS} eligible parameters "
            f"(lane-dense output); got {len(names)}")

    # Stream the slabs in the parameters' native dtype when it is uniform
    # (bf16 params => half the HBM bytes); fall back to f32 otherwise.
    dtypes = {np.dtype(jnp.asarray(local_params[n]).dtype) for n in names}
    dtypes |= {np.dtype(jnp.asarray(global_params[n]).dtype) for n in names}
    allowed = {np.dtype(np.float32), np.dtype(jnp.bfloat16), np.dtype(np.float16)}
    if len(dtypes) == 1 and next(iter(dtypes)) in allowed:
        slab_dtype = next(iter(dtypes))
    else:
        slab_dtype = np.dtype(np.float32)

    if num_cores is None:
        num_cores = _default_num_cores()
    num_cores = max(1, int(num_cores))
    if tile_rows is None:
        tile_rows = _default_tile_rows()
    tile_rows = max(quantum_rows, _round_up(int(tile_rows), quantum_rows))

    q_elems = quantum_rows * _LANES
    subs_per_param, seg = [], []
    for p, name in enumerate(names):
        n = math.prod(jnp.asarray(local_params[name]).shape)
        nsub = max(1, -(-int(n) // q_elems))
        subs_per_param.append(nsub)
        seg.extend([p] * nsub)
    real_subs = len(seg)

    max_subs_per_block = tile_rows // quantum_rows
    if real_subs == 0:
        subs_per_block = 1
    else:
        # Do not stream megabytes of zero padding for tiny models: shrink the
        # block to the real work, never above the generation's target tile.
        subs_per_block = min(max_subs_per_block,
                             max(1, -(-real_subs // num_cores)))
    blocks = max(1, -(-real_subs // subs_per_block))
    blocks = _round_up(blocks, num_cores)
    total_subs = blocks * subs_per_block
    seg = seg + [_DUMMY_SEG] * (total_subs - real_subs)

    blocks_per_core = blocks // num_cores
    subs_per_core = blocks_per_core * subs_per_block
    flush = []
    for g in range(total_subs):
        last_of_core = ((g + 1) % subs_per_core) == 0
        boundary = (g + 1 == total_subs) or (seg[g + 1] != seg[g])
        flush.append(seg[g] if (last_of_core or boundary) else -1)
    flush_arr = jnp.asarray(flush, jnp.int32)

    spec = ProxSpec(
        names=tuple(names),
        subs_per_param=tuple(subs_per_param),
        slab_dtype=slab_dtype,
        quantum_rows=quantum_rows,
        subs_per_block=subs_per_block,
        blocks_per_core=blocks_per_core,
        num_cores=num_cores,
        total_subblocks=total_subs,
        flush_arr=flush_arr,
        global_slab=None)
    spec.global_slab = pack_slab(global_params, spec)   # packed ONCE
    return spec


# ---------------------------------------------------------------------------
# Fused kernel: (optional) cross-entropy + streamed per-parameter SSQ.
# ---------------------------------------------------------------------------
def _make_fused_kernel(subs_per_block, quantum_rows, fuse_ce):
    q_rows = quantum_rows

    def kernel(*args):
        flush_ref = args[0]                               # SMEM i32[total_subs]
        if fuse_ce:
            logits_ref, targets_ref, local_ref, global_ref, out_ref, acc_ref = args[1:]
        else:
            local_ref, global_ref, out_ref, acc_ref = args[1:]

        c = pl.program_id(0)          # core-split axis ("parallel", v7x 2 TCs)
        i = pl.program_id(1)          # streaming / reduction axis ("arbitrary")
        bpc = pl.num_programs(1)

        @pl.when(i == 0)
        def _init():
            out_ref[...] = jnp.zeros_like(out_ref)
            acc_ref[...] = jnp.zeros_like(acc_ref)

        if fuse_ce:
            # Cross-entropy (batch SUM; /B on host) computed once, on the core
            # that also owns the zero-padding blocks (load-balance on v7x).
            # TODO(synk): no ignore_index / target-range validation (PyTorch
            # would raise on out-of-range targets; here the target term drops).
            @pl.when((c == pl.num_programs(0) - 1) & (i == 0))
            def _ce():
                logits = logits_ref[...].astype(jnp.float32)        # [B, C]
                tgt = targets_ref[...]                               # [B, 1] i32
                b, ncls = logits.shape
                m = jnp.max(logits, axis=-1, keepdims=True)
                z = logits - m
                lse = jnp.log(jnp.sum(jnp.exp(z), axis=-1, keepdims=True))
                col = jax.lax.broadcasted_iota(jnp.int32, (b, ncls), 1)
                z_tgt = jnp.sum(jnp.where(col == tgt, z, 0.0), axis=-1,
                                keepdims=True)
                ce_sum = jnp.sum(lse - z_tgt)
                lane = jax.lax.broadcasted_iota(jnp.int32, out_ref.shape, 2)
                out_ref[...] += jnp.where(lane == _CE_LANE, ce_sum, 0.0)

        # ---- streamed SSQ: VPU-only accumulation per quantum sub-block ------
        base_sub = (c * bpc + i) * subs_per_block
        for qi in range(subs_per_block):                  # static, fully unrolled
            r0 = qi * q_rows
            d = (local_ref[pl.ds(r0, q_rows), :].astype(jnp.float32)
                 - global_ref[pl.ds(r0, q_rows), :].astype(jnp.float32))
            d2 = d * d
            # (q_rows,128)->(q_rows/8,8,128) + sum(axis=0) is tile-compatible
            # (straight vreg adds, no VMEM copy).
            acc_ref[...] += jnp.sum(
                d2.reshape(q_rows // _SUBLANES, _SUBLANES, _LANES), axis=0)

            # Flush the vreg accumulator into the lane-dense output only at a
            # parameter boundary / end of this core's range (host-precomputed).
            fid = flush_ref[base_sub + qi]

            @pl.when(fid >= 0)
            def _flush():
                total = jnp.sum(acc_ref[...])             # one cross-lane reduce
                lane = jax.lax.broadcasted_iota(jnp.int32, out_ref.shape, 2)
                out_ref[...] += jnp.where(lane == fid, total, 0.0)
                acc_ref[...] = jnp.zeros_like(acc_ref)

    return kernel


# ---------------------------------------------------------------------------
# Fallback CE kernel, batch-tiled (used when logits are too big to keep
# resident inside the fused kernel -- v7x 64 MiB VMEM guard).
# ---------------------------------------------------------------------------
def _make_ce_kernel(total_b):
    def kernel(logits_ref, targets_ref, out_ref):
        i = pl.program_id(0)

        @pl.when(i == 0)
        def _init():
            out_ref[...] = jnp.zeros_like(out_ref)

        logits = logits_ref[...].astype(jnp.float32)                 # [tb, C]
        tgt = targets_ref[...]                                       # [tb, 1]
        tb, ncls = logits.shape
        row = i * tb + jax.lax.broadcasted_iota(jnp.int32, (tb, 1), 0)
        valid = row < total_b
        m = jnp.max(logits, axis=-1, keepdims=True)
        z = logits - m
        lse = jnp.log(jnp.sum(jnp.exp(z), axis=-1, keepdims=True))
        col = jax.lax.broadcasted_iota(jnp.int32, (tb, ncls), 1)
        z_tgt = jnp.sum(jnp.where(col == tgt, z, 0.0), axis=-1, keepdims=True)
        part = jnp.sum(jnp.where(valid, lse - z_tgt, 0.0))
        lane = jax.lax.broadcasted_iota(jnp.int32, out_ref.shape, 1)
        out_ref[...] += jnp.where(lane == _CE_LANE, part, 0.0)
    return kernel


def _cross_entropy_sum(outputs, targets2):
    B, C = outputs.shape
    rows_budget = ((2 << 20) // max(1, C * 4)) // _SUBLANES * _SUBLANES
    tb = int(min(512, max(_SUBLANES, rows_budget), _round_up(B, _SUBLANES)))
    b_pad = _round_up(B, tb)
    logits, tgt = outputs, targets2
    if b_pad != B:
        logits = jnp.pad(logits, ((0, b_pad - B), (0, 0)))
        tgt = jnp.pad(tgt, ((0, b_pad - B), (0, 0)))

    out = pl.pallas_call(
        _make_ce_kernel(B),
        out_shape=jax.ShapeDtypeStruct((1, _LANES), jnp.float32),
        grid_spec=pltpu.PrefetchScalarGridSpec(
            num_scalar_prefetch=0,
            grid=(b_pad // tb,),
            in_specs=[pl.BlockSpec((tb, C), lambda i: (i, 0)),
                      pl.BlockSpec((tb, 1), lambda i: (i, 0))],
            out_specs=pl.BlockSpec((1, _LANES), lambda i: (0, 0)),
        ),
        compiler_params=pltpu.CompilerParams(
            dimension_semantics=("arbitrary",),
            vmem_limit_bytes=int(max(8 << 20, 8 * tb * C * 4)),
        ),
    )(logits, tgt)
    return out[0, _CE_LANE]


# ---------------------------------------------------------------------------
# prox_loss.forward equivalent
# ---------------------------------------------------------------------------
def prox_loss_forward(outputs, targets, local_params=None, global_params=None,
                      mu=0.0, *, spec=None, local_slab=None,
                      ce_fuse_max_bytes=_CE_FUSE_MAX_BYTES):
    if spec is None:
        spec = make_prox_spec(local_params, global_params)
    if local_slab is None:
        local_slab = pack_slab(local_params, spec)

    B, C = outputs.shape
    targets2 = targets.astype(jnp.int32).reshape(B, 1)

    tile_rows = spec.subs_per_block * spec.quantum_rows
    bpc = spec.blocks_per_core
    num_cores = spec.num_cores
    fuse_ce = (B * C * np.dtype(outputs.dtype).itemsize) <= ce_fuse_max_bytes
    num_buf = 3 if _is_v7x() else 2    # v7x: hide per-step overhead behind DMA

    def _slab_spec():
        idx = lambda c, i, flush: (c * bpc + i, 0)
        if num_buf > 2:
            try:
                return pl.BlockSpec((tile_rows, _LANES), idx,
                                    pipeline_mode=pl.Buffered(num_buf))
            except TypeError:
                pass
        return pl.BlockSpec((tile_rows, _LANES), idx)

    in_specs, args = [], [spec.flush_arr]
    if fuse_ce:
        in_specs += [pl.BlockSpec((B, C), lambda c, i, flush: (0, 0)),
                     pl.BlockSpec((B, 1), lambda c, i, flush: (0, 0))]
        args += [outputs, targets2]
    in_specs += [_slab_spec(), _slab_spec()]
    args += [local_slab, spec.global_slab]

    # VMEM budget ~2x the actual buffer footprint (review: don't hand the
    # compiler a flat 32 MiB), floored for compiler headroom.
    slab_bytes = 2 * num_buf * tile_rows * _LANES * np.dtype(spec.slab_dtype).itemsize
    ce_bytes = 2 * (B * C + B) * 4 if fuse_ce else 0
    misc = (num_cores * _LANES + _SUBLANES * _LANES) * 4 + (256 << 10)
    vmem_limit = int(min(64 << 20, max(8 << 20, 2 * (slab_bytes + ce_bytes + misc))))

    kernel = _make_fused_kernel(spec.subs_per_block, spec.quantum_rows, fuse_ce)

    out = pl.pallas_call(
        kernel,
        out_shape=jax.ShapeDtypeStruct((num_cores, 1, _LANES), jnp.float32),
        grid_spec=pltpu.PrefetchScalarGridSpec(
            num_scalar_prefetch=1,
            grid=(num_cores, bpc),
            in_specs=in_specs,
            out_specs=pl.BlockSpec((1, 1, _LANES), lambda c, i, flush: (c, 0, 0)),
            scratch_shapes=[pltpu.VMEM((_SUBLANES, _LANES), jnp.float32)],
        ),
        compiler_params=pltpu.CompilerParams(
            dimension_semantics=("parallel", "arbitrary"),
            vmem_limit_bytes=vmem_limit,
        ),
    )(*args)

    vec = jnp.sum(out, axis=(0, 1))                    # [128] lane-dense results
    if fuse_ce:
        ce = vec[_CE_LANE] / jnp.float32(B)
    else:
        ce = _cross_entropy_sum(outputs, targets2) / jnp.float32(B)

    num_params = len(spec.names)
    if num_params:
        prox = jnp.sum(jnp.sqrt(vec[:num_params]))     # sum of per-param L2 norms
    else:
        prox = jnp.float32(0.0)
    return ce + jnp.float32(mu) / 2.0 * prox


# Pure-JAX reference for sanity checking.
def _ref_forward(outputs, targets, local_params, global_params, mu):
    logp = jax.nn.log_softmax(outputs.astype(jnp.float32), axis=-1)
    ce = -jnp.mean(jnp.take_along_axis(logp, targets[:, None].astype(jnp.int32), axis=-1))
    prox = 0.0
    for name, lp in local_params.items():
        if 'bn' in name:
            continue
        gp = global_params.get(name)
        if gp is not None and lp.shape == gp.shape:
            prox = prox + jnp.linalg.norm((lp - gp).astype(jnp.float32).reshape(-1))
    return ce + mu / 2.0 * prox


if __name__ == "__main__":
    key = jax.random.PRNGKey(0)
    k_out, k_tgt, *pk = jax.random.split(key, 12)

    B, C = 8, 10
    outputs = jax.random.normal(k_out, (B, C), jnp.float32)           # logits [B, C]
    targets = jax.random.randint(k_tgt, (B,), 0, C, jnp.int32)        # class ids [B]

    # Deterministic synthetic "model" parameters (local vs global); 'bn' skipped.
    param_shapes = {
        'conv1.weight': (4, 3, 3, 3),
        'conv1.bias':   (4,),
        'bn1.weight':   (4,),          # skipped by the 'bn' filter
        'bn1.bias':     (4,),          # skipped by the 'bn' filter
        'fc.weight':    (10, 64),
        'fc.bias':      (10,),
    }
    local_params, global_params = {}, {}
    for idx, (name, shp) in enumerate(param_shapes.items()):
        kl, kg = jax.random.split(pk[idx], 2)
        local_params[name] = jax.random.normal(kl, shp, jnp.float32) * 0.1
        global_params[name] = jax.random.normal(kg, shp, jnp.float32) * 0.1

    mu = 0.5

    # Step-invariant FedProx state (global slab + flush table): built ONCE.
    spec = make_prox_spec(local_params, global_params)

    ref = _ref_forward(outputs, targets, local_params, global_params, mu)

    # 1) default path: CE fused into the streaming kernel.
    total = prox_loss_forward(outputs, targets, local_params, global_params,
                              mu, spec=spec)
    total = jax.block_until_ready(total)
    assert jnp.allclose(total, ref, rtol=1e-5, atol=1e-5), (total, ref)

    # 2) large-logits guard path: CE in its own batch-tiled kernel.
    total2 = prox_loss_forward(outputs, targets, local_params, global_params,
                               mu, spec=spec, ce_fuse_max_bytes=0)
    total2 = jax.block_until_ready(total2)
    assert jnp.allclose(total2, ref, rtol=1e-5, atol=1e-5), (total2, ref)

    print("KERNEL_OK")
</pallas_src>

<mosaic_0001>
module attributes {stable_mosaic.version = 11 : i64} {
  func.func @kernel(%arg0: i32, %arg1: i32, %arg2: memref<4xi32, #tpu.memory_space<smem>>, %arg3: memref<8x10xf32, #tpu.memory_space<vmem>>, %arg4: memref<8x1xi32, #tpu.memory_space<vmem>>, %arg5: memref<256x128xf32, #tpu.memory_space<vmem>>, %arg6: memref<256x128xf32, #tpu.memory_space<vmem>>, %arg7: memref<1x1x128xf32, #tpu.memory_space<vmem>>, %arg8: memref<8x128xf32, #tpu.memory_space<vmem>>) attributes {dimension_semantics = [#tpu.dimension_semantics<parallel>, #tpu.dimension_semantics<arbitrary>], iteration_bounds = array<i64: 1, 1>, scalar_prefetch = 1 : i64, scratch_operands = 1 : i64, tpu.core_type = #tpu.core_type<tc>, window_params = [{pipeline_mode = #tpu.pipeline_mode<synchronous>, transform_indices = @transform_0, window_bounds = array<i64: 8, 10>}, {pipeline_mode = #tpu.pipeline_mode<synchronous>, transform_indices = @transform_1, window_bounds = array<i64: 8, 1>}, {transform_indices = @transform_2, window_bounds = array<i64: 256, 128>}, {transform_indices = @transform_3, window_bounds = array<i64: 256, 128>}, {transform_indices = @transform_4, window_bounds = array<i64: 1, 1, 128>}]} {
    %c0_i32 = arith.constant 0 : i32
    %0 = arith.cmpi eq, %arg1, %c0_i32 : i32
    %1 = arith.extui %0 : i1 to i32
    %c0_i32_0 = arith.constant 0 : i32
    %2 = arith.cmpi ne, %1, %c0_i32_0 : i32
    scf.if %2 {
      %cst_45 = arith.constant 0.000000e+00 : f32
      %71 = vector.broadcast %cst_45 : f32 to vector<1x1x128xf32>
      %c0_46 = arith.constant 0 : index
      %c0_47 = arith.constant 0 : index
      %c0_48 = arith.constant 0 : index
      %72 = vector.load %arg7[%c0_46, %c0_47, %c0_48] : memref<1x1x128xf32, #tpu.memory_space<vmem>>, vector<1x1x128xf32>
      tpu.vector_store %arg7[%c0_46, %c0_47, %c0_48], %71 {strides = array<i32>} : memref<1x1x128xf32, #tpu.memory_space<vmem>>, vector<1x1x128xf32>,
      %cst_49 = arith.constant 0.000000e+00 : f32
      %73 = vector.broadcast %cst_49 : f32 to vector<8x128xf32>
      %c0_50 = arith.constant 0 : index
      %c0_51 = arith.constant 0 : index
      %74 = vector.load %arg8[%c0_50, %c0_51] : memref<8x128xf32, #tpu.memory_space<vmem>>, vector<8x128xf32>
      tpu.vector_store %arg8[%c0_50, %c0_51], %73 {strides = array<i32>} : memref<8x128xf32, #tpu.memory_space<vmem>>, vector<8x128xf32>,
    } else {
    }
    %c0_i32_1 = arith.constant 0 : i32
    %3 = arith.cmpi eq, %arg0, %c0_i32_1 : i32
    %c0_i32_2 = arith.constant 0 : i32
    %4 = arith.cmpi eq, %arg1, %c0_i32_2 : i32
    %5 = arith.andi %3, %4 : i1
    %6 = arith.extui %5 : i1 to i32
    %c0_i32_3 = arith.constant 0 : i32
    %7 = arith.cmpi ne, %6, %c0_i32_3 : i32
    scf.if %7 {
      %c0_45 = arith.constant 0 : index
      %c0_46 = arith.constant 0 : index
      %71 = vector.load %arg3[%c0_45, %c0_46] : memref<8x10xf32, #tpu.memory_space<vmem>>, vector<8x10xf32>
      %c0_47 = arith.constant 0 : index
      %c0_48 = arith.constant 0 : index
      %72 = vector.load %arg4[%c0_47, %c0_48] : memref<8x1xi32, #tpu.memory_space<vmem>>, vector<8x1xi32>
      %cst_49 = arith.constant dense<0xFF800000> : vector<8xf32>
      %73 = vector.multi_reduction <maximumf>, %71, %cst_49 [1] : vector<8x10xf32> to vector<8xf32>
      %74 = vector.shape_cast %73 : vector<8xf32> to vector<8x1xf32>
      %75 = vector.broadcast %74 : vector<8x1xf32> to vector<8x10xf32>
      %76 = arith.subf %71, %75 : vector<8x10xf32>
      %77 = math.exp %76 : vector<8x10xf32>
      %cst_50 = arith.constant dense<0.000000e+00> : vector<8xf32>
      %78 = vector.multi_reduction <add>, %77, %cst_50 [1] : vector<8x10xf32> to vector<8xf32>
      %79 = vector.shape_cast %78 : vector<8xf32> to vector<8x1xf32>
      %80 = math.log %79 : vector<8x1xf32>
      %81 = tpu.iota {dimensions = array<i32: 1>} : vector<8x10xi32>
      %82 = vector.broadcast %72 : vector<8x1xi32> to vector<8x10xi32>
      %83 = arith.cmpi eq, %81, %82 : vector<8x10xi32>
      %cst_51 = arith.constant 0.000000e+00 : f32
      %84 = vector.broadcast %cst_51 : f32 to vector<8x10xf32>
      %85 = arith.select %83, %76, %84 : vector<8x10xi1>, vector<8x10xf32>
      %cst_52 = arith.constant dense<0.000000e+00> : vector<8xf32>
      %86 = vector.multi_reduction <add>, %85, %cst_52 [1] : vector<8x10xf32> to vector<8xf32>
      %87 = vector.shape_cast %86 : vector<8xf32> to vector<8x1xf32>
      %88 = arith.subf %80, %87 : vector<8x1xf32>
      %89 = vector.shape_cast %88 : vector<8x1xf32> to vector<1x8x1xf32>
      %cst_53 = arith.constant dense<0.000000e+00> : vector<1xf32>
      %90 = vector.multi_reduction <add>, %89, %cst_53 [1, 2] : vector<1x8x1xf32> to vector<1xf32>
      %91 = vector.shape_cast %90 : vector<1xf32> to vector<1x1x1xf32>
      %92 = vector.extract %91[0, 0, 0] : f32 from vector<1x1x1xf32>
      %93 = tpu.iota {dimensions = array<i32: 2>} : vector<1x1x128xi32>
      %c0_54 = arith.constant 0 : index
      %c0_55 = arith.constant 0 : index
      %c0_56 = arith.constant 0 : index
      %94 = vector.load %arg7[%c0_54, %c0_55, %c0_56] : memref<1x1x128xf32, #tpu.memory_space<vmem>>, vector<1x1x128xf32>
      %c127_i32 = arith.constant 127 : i32
      %95 = vector.broadcast %c127_i32 : i32 to vector<1x1x128xi32>
      %96 = arith.cmpi eq, %93, %95 : vector<1x1x128xi32>
      %cst_57 = arith.constant 0.000000e+00 : f32
      %97 = vector.broadcast %92 : f32 to vector<1x1x128xf32>
      %98 = vector.broadcast %cst_57 : f32 to vector<1x1x128xf32>
      %99 = arith.select %96, %97, %98 : vector<1x1x128xi1>, vector<1x1x128xf32>
      %100 = arith.addf %94, %99 : vector<1x1x128xf32>
      %c0_58 = arith.constant 0 : index
      %c0_59 = arith.constant 0 : index
      %c0_60 = arith.constant 0 : index
      %101 = vector.load %arg7[%c0_58, %c0_59, %c0_60] : memref<1x1x128xf32, #tpu.memory_space<vmem>>, vector<1x1x128xf32>
      tpu.vector_store %arg7[%c0_58, %c0_59, %c0_60], %100 {strides = array<i32>} : memref<1x1x128xf32, #tpu.memory_space<vmem>>, vector<1x1x128xf32>,
    } else {
    }
    %c1_i32 = arith.constant 1 : i32
    %8 = arith.muli %arg0, %c1_i32 : i32
    %9 = arith.addi %8, %arg1 : i32
    %c4_i32 = arith.constant 4 : i32
    %10 = arith.muli %9, %c4_i32 : i32
    %c0 = arith.constant 0 : index
    %c0_4 = arith.constant 0 : index
    %11 = vector.load %arg5[%c0, %c0_4] : memref<256x128xf32, #tpu.memory_space<vmem>>, vector<64x128xf32>
    %c0_5 = arith.constant 0 : index
    %c0_6 = arith.constant 0 : index
    %12 = vector.load %arg6[%c0_5, %c0_6] : memref<256x128xf32, #tpu.memory_space<vmem>>, vector<64x128xf32>
    %13 = arith.subf %11, %12 : vector<64x128xf32>
    %14 = arith.mulf %13, %13 : vector<64x128xf32>
    %c0_7 = arith.constant 0 : index
    %c0_8 = arith.constant 0 : index
    %15 = vector.load %arg8[%c0_7, %c0_8] : memref<8x128xf32, #tpu.memory_space<vmem>>, vector<8x128xf32>
    %16 = vector.shape_cast %14 : vector<64x128xf32> to vector<8x8x128xf32>
    %cst = arith.constant dense<0.000000e+00> : vector<8x128xf32>
    %17 = vector.multi_reduction <add>, %16, %cst [0] : vector<8x8x128xf32> to vector<8x128xf32>
    %18 = arith.addf %15, %17 : vector<8x128xf32>
    %c0_9 = arith.constant 0 : index
    %c0_10 = arith.constant 0 : index
    %19 = vector.load %arg8[%c0_9, %c0_10] : memref<8x128xf32, #tpu.memory_space<vmem>>, vector<8x128xf32>
    tpu.vector_store %arg8[%c0_9, %c0_10], %18 {strides = array<i32>} : memref<8x128xf32, #tpu.memory_space<vmem>>, vector<8x128xf32>,
    %c0_i32_11 = arith.constant 0 : i32
    %20 = arith.addi %10, %c0_i32_11 : i32
    %21 = arith.index_cast %20 : i32 to index
    %22 = memref.load %arg2[%21] : memref<4xi32, #tpu.memory_space<smem>>
    %c0_i32_12 = arith.constant 0 : i32
    %23 = arith.cmpi sge, %22, %c0_i32_12 : i32
    %24 = arith.extui %23 : i1 to i32
    %c0_i32_13 = arith.constant 0 : i32
    %25 = arith.cmpi ne, %24, %c0_i32_13 : i32
    scf.if %25 {
      %c0_45 = arith.constant 0 : index
      %c0_46 = arith.constant 0 : index
      %71 = vector.load %arg8[%c0_45, %c0_46] : memref<8x128xf32, #tpu.memory_space<vmem>>, vector<8x128xf32>
      %72 = vector.shape_cast %71 : vector<8x128xf32> to vector<1x8x128xf32>
      %cst_47 = arith.constant dense<0.000000e+00> : vector<1xf32>
      %73 = vector.multi_reduction <add>, %72, %cst_47 [1, 2] : vector<1x8x128xf32> to vector<1xf32>
      %74 = vector.shape_cast %73 : vector<1xf32> to vector<1x1x1xf32>
      %75 = vector.extract %74[0, 0, 0] : f32 from vector<1x1x1xf32>
      %76 = tpu.iota {dimensions = array<i32: 2>} : vector<1x1x128xi32>
      %c0_48 = arith.constant 0 : index
      %c0_49 = arith.constant 0 : index
      %c0_50 = arith.constant 0 : index
      %77 = vector.load %arg7[%c0_48, %c0_49, %c0_50] : memref<1x1x128xf32, #tpu.memory_space<vmem>>, vector<1x1x128xf32>
      %78 = vector.broadcast %22 : i32 to vector<1x1x128xi32>
      %79 = arith.cmpi eq, %76, %78 : vector<1x1x128xi32>
      %cst_51 = arith.constant 0.000000e+00 : f32
      %80 = vector.broadcast %75 : f32 to vector<1x1x128xf32>
      %81 = vector.broadcast %cst_51 : f32 to vector<1x1x128xf32>
      %82 = arith.select %79, %80, %81 : vector<1x1x128xi1>, vector<1x1x128xf32>
      %83 = arith.addf %77, %82 : vector<1x1x128xf32>
      %c0_52 = arith.constant 0 : index
      %c0_53 = arith.constant 0 : index
      %c0_54 = arith.constant 0 : index
      %84 = vector.load %arg7[%c0_52, %c0_53, %c0_54] : memref<1x1x128xf32, #tpu.memory_space<vmem>>, vector<1x1x128xf32>
      tpu.vector_store %arg7[%c0_52, %c0_53, %c0_54], %83 {strides = array<i32>} : memref<1x1x128xf32, #tpu.memory_space<vmem>>, vector<1x1x128xf32>,
      %cst_55 = arith.constant 0.000000e+00 : f32
      %85 = vector.broadcast %cst_55 : f32 to vector<8x128xf32>
      %c0_56 = arith.constant 0 : index
      %c0_57 = arith.constant 0 : index
      %86 = vector.load %arg8[%c0_56, %c0_57] : memref<8x128xf32, #tpu.memory_space<vmem>>, vector<8x128xf32>
      tpu.vector_store %arg8[%c0_56, %c0_57], %85 {strides = array<i32>} : memref<8x128xf32, #tpu.memory_space<vmem>>, vector<8x128xf32>,
    } else {
    }
    %c64 = arith.constant 64 : index
    %c0_14 = arith.constant 0 : index
    %26 = vector.load %arg5[%c64, %c0_14] : memref<256x128xf32, #tpu.memory_space<vmem>>, vector<64x128xf32>
    %c64_15 = arith.constant 64 : index
    %c0_16 = arith.constant 0 : index
    %27 = vector.load %arg6[%c64_15, %c0_16] : memref<256x128xf32, #tpu.memory_space<vmem>>, vector<64x128xf32>
    %28 = arith.subf %26, %27 : vector<64x128xf32>
    %29 = arith.mulf %28, %28 : vector<64x128xf32>
    %c0_17 = arith.constant 0 : index
    %c0_18 = arith.constant 0 : index
    %30 = vector.load %arg8[%c0_17, %c0_18] : memref<8x128xf32, #tpu.memory_space<vmem>>, vector<8x128xf32>
    %31 = vector.shape_cast %29 : vector<64x128xf32> to vector<8x8x128xf32>
    %cst_19 = arith.constant dense<0.000000e+00> : vector<8x128xf32>
    %32 = vector.multi_reduction <add>, %31, %cst_19 [0] : vector<8x8x128xf32> to vector<8x128xf32>
    %33 = arith.addf %30, %32 : vector<8x128xf32>
    %c0_20 = arith.constant 0 : index
    %c0_21 = arith.constant 0 : index
    %34 = vector.load %arg8[%c0_20, %c0_21] : memref<8x128xf32, #tpu.memory_space<vmem>>, vector<8x128xf32>
    tpu.vector_store %arg8[%c0_20, %c0_21], %33 {strides = array<i32>} : memref<8x128xf32, #tpu.memory_space<vmem>>, vector<8x128xf32>,
    %c1_i32_22 = arith.constant 1 : i32
    %35 = arith.addi %10, %c1_i32_22 : i32
    %36 = arith.index_cast %35 : i32 to index
    %37 = memref.load %arg2[%36] : memref<4xi32, #tpu.memory_space<smem>>
    %c0_i32_23 = arith.constant 0 : i32
    %38 = arith.cmpi sge, %37, %c0_i32_23 : i32
    %39 = arith.extui %38 : i1 to i32
    %c0_i32_24 = arith.constant 0 : i32
    %40 = arith.cmpi ne, %39, %c0_i32_24 : i32
    scf.if %40 {
      %c0_45 = arith.constant 0 : index
      %c0_46 = arith.constant 0 : index
      %71 = vector.load %arg8[%c0_45, %c0_46] : memref<8x128xf32, #tpu.memory_space<vmem>>, vector<8x128xf32>
      %72 = vector.shape_cast %71 : vector<8x128xf32> to vector<1x8x128xf32>
      %cst_47 = arith.constant dense<0.000000e+00> : vector<1xf32>
      %73 = vector.multi_reduction <add>, %72, %cst_47 [1, 2] : vector<1x8x128xf32> to vector<1xf32>
      %74 = vector.shape_cast %73 : vector<1xf32> to vector<1x1x1xf32>
      %75 = vector.extract %74[0, 0, 0] : f32 from vector<1x1x1xf32>
      %76 = tpu.iota {dimensions = array<i32: 2>} : vector<1x1x128xi32>
      %c0_48 = arith.constant 0 : index
      %c0_49 = arith.constant 0 : index
      %c0_50 = arith.constant 0 : index
      %77 = vector.load %arg7[%c0_48, %c0_49, %c0_50] : memref<1x1x128xf32, #tpu.memory_space<vmem>>, vector<1x1x128xf32>
      %78 = vector.broadcast %37 : i32 to vector<1x1x128xi32>
      %79 = arith.cmpi eq, %76, %78 : vector<1x1x128xi32>
      %cst_51 = arith.constant 0.000000e+00 : f32
      %80 = vector.broadcast %75 : f32 to vector<1x1x128xf32>
      %81 = vector.broadcast %cst_51 : f32 to vector<1x1x128xf32>
      %82 = arith.select %79, %80, %81 : vector<1x1x128xi1>, vector<1x1x128xf32>
      %83 = arith.addf %77, %82 : vector<1x1x128xf32>
      %c0_52 = arith.constant 0 : index
      %c0_53 = arith.constant 0 : index
      %c0_54 = arith.constant 0 : index
      %84 = vector.load %arg7[%c0_52, %c0_53, %c0_54] : memref<1x1x128xf32, #tpu.memory_space<vmem>>, vector<1x1x128xf32>
      tpu.vector_store %arg7[%c0_52, %c0_53, %c0_54], %83 {strides = array<i32>} : memref<1x1x128xf32, #tpu.memory_space<vmem>>, vector<1x1x128xf32>,
      %cst_55 = arith.constant 0.000000e+00 : f32
      %85 = vector.broadcast %cst_55 : f32 to vector<8x128xf32>
      %c0_56 = arith.constant 0 : index
      %c0_57 = arith.constant 0 : index
      %86 = vector.load %arg8[%c0_56, %c0_57] : memref<8x128xf32, #tpu.memory_space<vmem>>, vector<8x128xf32>
      tpu.vector_store %arg8[%c0_56, %c0_57], %85 {strides = array<i32>} : memref<8x128xf32, #tpu.memory_space<vmem>>, vector<8x128xf32>,
    } else {
    }
    %c128 = arith.constant 128 : index
    %c0_25 = arith.constant 0 : index
    %41 = vector.load %arg5[%c128, %c0_25] : memref<256x128xf32, #tpu.memory_space<vmem>>, vector<64x128xf32>
    %c128_26 = arith.constant 128 : index
    %c0_27 = arith.constant 0 : index
    %42 = vector.load %arg6[%c128_26, %c0_27] : memref<256x128xf32, #tpu.memory_space<vmem>>, vector<64x128xf32>
    %43 = arith.subf %41, %42 : vector<64x128xf32>
    %44 = arith.mulf %43, %43 : vector<64x128xf32>
    %c0_28 = arith.constant 0 : index
    %c0_29 = arith.constant 0 : index
    %45 = vector.load %arg8[%c0_28, %c0_29] : memref<8x128xf32, #tpu.memory_space<vmem>>, vector<8x128xf32>
    %46 = vector.shape_cast %44 : vector<64x128xf32> to vector<8x8x128xf32>
    %cst_30 = arith.constant dense<0.000000e+00> : vector<8x128xf32>
    %47 = vector.multi_reduction <add>, %46, %cst_30 [0] : vector<8x8x128xf32> to vector<8x128xf32>
    %48 = arith.addf %45, %47 : vector<8x128xf32>
    %c0_31 = arith.constant 0 : index
    %c0_32 = arith.constant 0 : index
    %49 = vector.load %arg8[%c0_31, %c0_32] : memref<8x128xf32, #tpu.memory_space<vmem>>, vector<8x128xf32>
    tpu.vector_store %arg8[%c0_31, %c0_32], %48 {strides = array<i32>} : memref<8x128xf32, #tpu.memory_space<vmem>>, vector<8x128xf32>,
    %c2_i32 = arith.constant 2 : i32
    %50 = arith.addi %10, %c2_i32 : i32
    %51 = arith.index_cast %50 : i32 to index
    %52 = memref.load %arg2[%51] : memref<4xi32, #tpu.memory_space<smem>>
    %c0_i32_33 = arith.constant 0 : i32
    %53 = arith.cmpi sge, %52, %c0_i32_33 : i32
    %54 = arith.extui %53 : i1 to i32
    %c0_i32_34 = arith.constant 0 : i32
    %55 = arith.cmpi ne, %54, %c0_i32_34 : i32
    scf.if %55 {
      %c0_45 = arith.constant 0 : index
      %c0_46 = arith.constant 0 : index
      %71 = vector.load %arg8[%c0_45, %c0_46] : memref<8x128xf32, #tpu.memory_space<vmem>>, vector<8x128xf32>
      %72 = vector.shape_cast %71 : vector<8x128xf32> to vector<1x8x128xf32>
      %cst_47 = arith.constant dense<0.000000e+00> : vector<1xf32>
      %73 = vector.multi_reduction <add>, %72, %cst_47 [1, 2] : vector<1x8x128xf32> to vector<1xf32>
      %74 = vector.shape_cast %73 : vector<1xf32> to vector<1x1x1xf32>
      %75 = vector.extract %74[0, 0, 0] : f32 from vector<1x1x1xf32>
      %76 = tpu.iota {dimensions = array<i32: 2>} : vector<1x1x128xi32>
      %c0_48 = arith.constant 0 : index
      %c0_49 = arith.constant 0 : index
      %c0_50 = arith.constant 0 : index
      %77 = vector.load %arg7[%c0_48, %c0_49, %c0_50] : memref<1x1x128xf32, #tpu.memory_space<vmem>>, vector<1x1x128xf32>
      %78 = vector.broadcast %52 : i32 to vector<1x1x128xi32>
      %79 = arith.cmpi eq, %76, %78 : vector<1x1x128xi32>
      %cst_51 = arith.constant 0.000000e+00 : f32
      %80 = vector.broadcast %75 : f32 to vector<1x1x128xf32>
      %81 = vector.broadcast %cst_51 : f32 to vector<1x1x128xf32>
      %82 = arith.select %79, %80, %81 : vector<1x1x128xi1>, vector<1x1x128xf32>
      %83 = arith.addf %77, %82 : vector<1x1x128xf32>
      %c0_52 = arith.constant 0 : index
      %c0_53 = arith.constant 0 : index
      %c0_54 = arith.constant 0 : index
      %84 = vector.load %arg7[%c0_52, %c0_53, %c0_54] : memref<1x1x128xf32, #tpu.memory_space<vmem>>, vector<1x1x128xf32>
      tpu.vector_store %arg7[%c0_52, %c0_53, %c0_54], %83 {strides = array<i32>} : memref<1x1x128xf32, #tpu.memory_space<vmem>>, vector<1x1x128xf32>,
      %cst_55 = arith.constant 0.000000e+00 : f32
      %85 = vector.broadcast %cst_55 : f32 to vector<8x128xf32>
      %c0_56 = arith.constant 0 : index
      %c0_57 = arith.constant 0 : index
      %86 = vector.load %arg8[%c0_56, %c0_57] : memref<8x128xf32, #tpu.memory_space<vmem>>, vector<8x128xf32>
      tpu.vector_store %arg8[%c0_56, %c0_57], %85 {strides = array<i32>} : memref<8x128xf32, #tpu.memory_space<vmem>>, vector<8x128xf32>,
    } else {
    }
    %c192 = arith.constant 192 : index
    %c0_35 = arith.constant 0 : index
    %56 = vector.load %arg5[%c192, %c0_35] : memref<256x128xf32, #tpu.memory_space<vmem>>, vector<64x128xf32>
    %c192_36 = arith.constant 192 : index
    %c0_37 = arith.constant 0 : index
    %57 = vector.load %arg6[%c192_36, %c0_37] : memref<256x128xf32, #tpu.memory_space<vmem>>, vector<64x128xf32>
    %58 = arith.subf %56, %57 : vector<64x128xf32>
    %59 = arith.mulf %58, %58 : vector<64x128xf32>
    %c0_38 = arith.constant 0 : index
    %c0_39 = arith.constant 0 : index
    %60 = vector.load %arg8[%c0_38, %c0_39] : memref<8x128xf32, #tpu.memory_space<vmem>>, vector<8x128xf32>
    %61 = vector.shape_cast %59 : vector<64x128xf32> to vector<8x8x128xf32>
    %cst_40 = arith.constant dense<0.000000e+00> : vector<8x128xf32>
    %62 = vector.multi_reduction <add>, %61, %cst_40 [0] : vector<8x8x128xf32> to vector<8x128xf32>
    %63 = arith.addf %60, %62 : vector<8x128xf32>
    %c0_41 = arith.constant 0 : index
    %c0_42 = arith.constant 0 : index
    %64 = vector.load %arg8[%c0_41, %c0_42] : memref<8x128xf32, #tpu.memory_space<vmem>>, vector<8x128xf32>
    tpu.vector_store %arg8[%c0_41, %c0_42], %63 {strides = array<i32>} : memref<8x128xf32, #tpu.memory_space<vmem>>, vector<8x128xf32>,
    %c3_i32 = arith.constant 3 : i32
    %65 = arith.addi %10, %c3_i32 : i32
    %66 = arith.index_cast %65 : i32 to index
    %67 = memref.load %arg2[%66] : memref<4xi32, #tpu.memory_space<smem>>
    %c0_i32_43 = arith.constant 0 : i32
    %68 = arith.cmpi sge, %67, %c0_i32_43 : i32
    %69 = arith.extui %68 : i1 to i32
    %c0_i32_44 = arith.constant 0 : i32
    %70 = arith.cmpi ne, %69, %c0_i32_44 : i32
    scf.if %70 {
      %c0_45 = arith.constant 0 : index
      %c0_46 = arith.constant 0 : index
      %71 = vector.load %arg8[%c0_45, %c0_46] : memref<8x128xf32, #tpu.memory_space<vmem>>, vector<8x128xf32>
      %72 = vector.shape_cast %71 : vector<8x128xf32> to vector<1x8x128xf32>
      %cst_47 = arith.constant dense<0.000000e+00> : vector<1xf32>
      %73 = vector.multi_reduction <add>, %72, %cst_47 [1, 2] : vector<1x8x128xf32> to vector<1xf32>
      %74 = vector.shape_cast %73 : vector<1xf32> to vector<1x1x1xf32>
      %75 = vector.extract %74[0, 0, 0] : f32 from vector<1x1x1xf32>
      %76 = tpu.iota {dimensions = array<i32: 2>} : vector<1x1x128xi32>
      %c0_48 = arith.constant 0 : index
      %c0_49 = arith.constant 0 : index
      %c0_50 = arith.constant 0 : index
      %77 = vector.load %arg7[%c0_48, %c0_49, %c0_50] : memref<1x1x128xf32, #tpu.memory_space<vmem>>, vector<1x1x128xf32>
      %78 = vector.broadcast %67 : i32 to vector<1x1x128xi32>
      %79 = arith.cmpi eq, %76, %78 : vector<1x1x128xi32>
      %cst_51 = arith.constant 0.000000e+00 : f32
      %80 = vector.broadcast %75 : f32 to vector<1x1x128xf32>
      %81 = vector.broadcast %cst_51 : f32 to vector<1x1x128xf32>
      %82 = arith.select %79, %80, %81 : vector<1x1x128xi1>, vector<1x1x128xf32>
      %83 = arith.addf %77, %82 : vector<1x1x128xf32>
      %c0_52 = arith.constant 0 : index
      %c0_53 = arith.constant 0 : index
      %c0_54 = arith.constant 0 : index
      %84 = vector.load %arg7[%c0_52, %c0_53, %c0_54] : memref<1x1x128xf32, #tpu.memory_space<vmem>>, vector<1x1x128xf32>
      tpu.vector_store %arg7[%c0_52, %c0_53, %c0_54], %83 {strides = array<i32>} : memref<1x1x128xf32, #tpu.memory_space<vmem>>, vector<1x1x128xf32>,
      %cst_55 = arith.constant 0.000000e+00 : f32
      %85 = vector.broadcast %cst_55 : f32 to vector<8x128xf32>
      %c0_56 = arith.constant 0 : index
      %c0_57 = arith.constant 0 : index
      %86 = vector.load %arg8[%c0_56, %c0_57] : memref<8x128xf32, #tpu.memory_space<vmem>>, vector<8x128xf32>
      tpu.vector_store %arg8[%c0_56, %c0_57], %85 {strides = array<i32>} : memref<8x128xf32, #tpu.memory_space<vmem>>, vector<8x128xf32>,
    } else {
    }
    return
  }
  func.func @transform_0(%arg0: i32, %arg1: i32, %arg2: memref<4xi32, #tpu.memory_space<smem>>) -> (i32, i32) {
    %c0_i32 = arith.constant 0 : i32
    %c0_i32_0 = arith.constant 0 : i32
    %c0_i32_1 = arith.constant 0 : i32
    return %c0_i32, %c0_i32_0 : i32, i32
  }
  func.func @transform_1(%arg0: i32, %arg1: i32, %arg2: memref<4xi32, #tpu.memory_space<smem>>) -> (i32, i32) {
    %c0_i32 = arith.constant 0 : i32
    %c0_i32_0 = arith.constant 0 : i32
    %c0_i32_1 = arith.constant 0 : i32
    return %c0_i32, %c0_i32_0 : i32, i32
  }
  func.func @transform_2(%arg0: i32, %arg1: i32, %arg2: memref<4xi32, #tpu.memory_space<smem>>) -> (i32, i32) {
    %c1_i32 = arith.constant 1 : i32
    %0 = arith.muli %arg0, %c1_i32 : i32
    %1 = arith.addi %0, %arg1 : i32
    %c0_i32 = arith.constant 0 : i32
    %c0_i32_0 = arith.constant 0 : i32
    return %1, %c0_i32 : i32, i32
  }
  func.func @transform_3(%arg0: i32, %arg1: i32, %arg2: memref<4xi32, #tpu.memory_space<smem>>) -> (i32, i32) {
    %c1_i32 = arith.constant 1 : i32
    %0 = arith.muli %arg0, %c1_i32 : i32
    %1 = arith.addi %0, %arg1 : i32
    %c0_i32 = arith.constant 0 : i32
    %c0_i32_0 = arith.constant 0 : i32
    return %1, %c0_i32 : i32, i32
  }
  func.func @transform_4(%arg0: i32, %arg1: i32, %arg2: memref<4xi32, #tpu.memory_space<smem>>) -> (i32, i32, i32) {
    %c0_i32 = arith.constant 0 : i32
    %c0_i32_0 = arith.constant 0 : i32
    %c0_i32_1 = arith.constant 0 : i32
    return %arg0, %c0_i32, %c0_i32_0 : i32, i32, i32
  }
}

</mosaic_0001>

<llo_original>
// kernel: tpu_custom_call.1
$region0: #{tpu_custom_call.1}
  #allocation0 [shape = 'u32[]', space=smem, size = 0x4, offset = 0x4, fixed_abs, tag = 'smem constant byte address 0x4 - core index']
  #allocation1 [shape = 'u32[144,128]{1,0:T(1,128)}', space=vmem, size = 0x12000, scoped, tag = 'internal scratch']
  #allocation2 [shape = 'f32[8,128]{1,0:T(8,128)}', space=vmem, size = 0x1000, scoped, tag = 'scratch operand']
  #allocation3 [shape = 's32[1]{0}', space=sflag, size = 0x4, scoped, tag = 'scoped memory for tpu_custom_call.1']
  #allocation4 [shape = 'u8[512]{0}', space=smem, size = 0x200, scoped, tag = 'prefetched SMEM operand 0']
  %s0 = inlined_call_operand.vmem [shape: s32[4], index: 0, kind: input, shape index: {}]
  %s1 = inlined_call_operand.vmem [shape: f32[8,10], index: 1, kind: input, shape index: {}]
  %s2 = inlined_call_operand.vmem [shape: s32[8,1], index: 2, kind: input, shape index: {}]
  %s3 = inlined_call_operand.hbm [shape: f32[256,128], index: 3, kind: input, shape index: {}]
  %s4 = inlined_call_operand.hbm [shape: f32[256,128], index: 4, kind: input, shape index: {}]
  %s5 = inlined_call_operand.hbm [shape: f32[1,1,128], index: 5, kind: output, shape index: {}]
  %s6 = sld [smem:[#allocation0]]
  $region58: #{tpu_custom_call.1} parent=0
    _
  %s8 = ssub.s32 1, %s6
  %s9 = scalar_select 0, %s8, %s6
  %s10 = sshll.u32 %s0, 4
  %s11 = int_to_ptr.vmem [resolvable:$true] %s10
  %13 = dma.vmem_to_smem %s11, 16, [#allocation4], [#allocation3]
  %14 = dma.done [#allocation3], 16
  %15 = sfence
  $region1: #{tpu_custom_call.1} parent=0
    #allocation5 [shape = 'u8[131072]{0}', space=vmem, size = 0x20000, scoped, tag = 'input window, operand 3, single buffered']
    #allocation6 [shape = 's32[1]{0}', space=sflag, size = 0x4, scoped, tag = 'scoped memory for tpu_custom_call.1']
    #allocation7 [shape = 's32[1]{0}', space=sflag, size = 0x4, scoped, tag = 'scoped memory for tpu_custom_call.1']
    #allocation8 [shape = 'u8[131072]{0}', space=vmem, size = 0x20000, scoped, tag = 'input window, operand 4, single buffered']
    #allocation9 [shape = 's32[1]{0}', space=sflag, size = 0x4, scoped, tag = 'scoped memory for tpu_custom_call.1']
    #allocation10 [shape = 'u8[512]{0}', space=vmem, size = 0x400, scoped, tag = 'output window, operand 0, single buffered']
    %16 = vsyncpa [#allocation6], 0
    %17 = vsyncpa [#allocation9], 0
    %18 = vsyncpa [#allocation7], 0
    // Predicated region
    $region2: #{tpu_custom_call.1} parent=1 // pred_check
      _
    $region3: #{tpu_custom_call.1} parent=1 // pred_check_branch
      %20 = sbr.rel (0) target = $region5
    $region4: #{tpu_custom_call.1} parent=1 // pred_region
      _
    $region5: #{tpu_custom_call.1} parent=1 // pred_fallthru
      _
    // Predicated region
    $region6: #{tpu_custom_call.1} parent=1 // pred_check
      _
    $region7: #{tpu_custom_call.1} parent=1 // pred_check_branch
      %22 = sbr.rel (0) target = $region9
    $region8: #{tpu_custom_call.1} parent=1 // pred_region
      _
    $region9: #{tpu_custom_call.1} parent=1 // pred_fallthru
      _
    // Predicated region
    $region10: #{tpu_custom_call.1} parent=1 // pred_check
      _
    $region11: #{tpu_custom_call.1} parent=1 // pred_check_branch
      %24 = sbr.rel (0) target = $region13
    $region12: #{tpu_custom_call.1} parent=1 // pred_region
      %s25 = sadd.s32 0, 0
      %s26 = smul.u32 32, %s25
      %s28 = ssub.s32 4096, 4096
      %29 = vsyncadd [#allocation6], %s28
      %s30 = smul.addr %s26, 128
      %s31 = scalar_lea.hbm %s3, %s30
      %s32 = sshll.u32 [#allocation5], 4
      %s33 = int_to_ptr.vmem [resolvable:$true] %s32
      %38 = dma.hbm_to_vmem [thread:$0]  %s31, 4096, %s33, [#allocation6], 128, 128, 8
    $region13: #{tpu_custom_call.1} parent=1 // pred_fallthru
      _
    // Predicated region
    $region14: #{tpu_custom_call.1} parent=1 // pred_check
      _
    $region15: #{tpu_custom_call.1} parent=1 // pred_check_branch
      %40 = sbr.rel (0) target = $region17
    $region16: #{tpu_custom_call.1} parent=1 // pred_region
      %s41 = sadd.s32 0, 0
      %s42 = smul.u32 32, %s41
      %s44 = ssub.s32 4096, 4096
      %45 = vsyncadd [#allocation9], %s44
      %s46 = smul.addr %s42, 128
      %s47 = scalar_lea.hbm %s4, %s46
      %s48 = sshll.u32 [#allocation8], 4
      %s49 = int_to_ptr.vmem [resolvable:$true] %s48
      %54 = dma.hbm_to_vmem [thread:$0]  %s47, 4096, %s49, [#allocation9], 128, 128, 8
    $region17: #{tpu_custom_call.1} parent=1 // pred_fallthru
      _
    // Predicated region
    $region18: #{tpu_custom_call.1} parent=1 // pred_check
      _
    $region19: #{tpu_custom_call.1} parent=1 // pred_check_branch
      %56 = sbr.rel (0) target = $region21
    $region20: #{tpu_custom_call.1} parent=1 // pred_region
      %57 = dma.done [#allocation6], 4096
    $region21: #{tpu_custom_call.1} parent=1 // pred_fallthru
      _
    // Predicated region
    $region22: #{tpu_custom_call.1} parent=1 // pred_check
      _
    $region23: #{tpu_custom_call.1} parent=1 // pred_check_branch
      %59 = sbr.rel (0) target = $region25
    $region24: #{tpu_custom_call.1} parent=1 // pred_region
      %60 = dma.done [#allocation9], 4096
    $region25: #{tpu_custom_call.1} parent=1 // pred_fallthru
      _
    %s61 = sadd.s32 0, 0
    %s62 = smul.u32 32, %s61
    %s63 = sadd.s32 0, 0
    %s64 = smul.u32 32, %s63
    %p65 = scmp.eq.s32.totalorder 0, 0
    // Predicated region
    $region26: #{tpu_custom_call.1} parent=1 // pred_check
      %p66 = pneg %p65
    $region27: #{tpu_custom_call.1} parent=1 // pred_check_branch
      %68 = sbr.rel (%p66) target = $region29
    $region28: #{tpu_custom_call.1} parent=1 // pred_region
      %69 = vst [vmem:[#allocation10] sm:$0x1] 0.0
      %70 = vst [vmem:[#allocation2] sm:$0xff] 0.0
    $region29: #{tpu_custom_call.1} parent=1 // pred_fallthru
      _
    %p71 = scmp.eq.s32.totalorder 0, 0
    %p72 = pnand %p71, %p65
    %p73 = pneg %p72
    // Predicated region
    $region30: #{tpu_custom_call.1} parent=1 // pred_check
      _
    $region31: #{tpu_custom_call.1} parent=1 // pred_check_branch
      %75 = sbr.rel (%p72) target = $region33
    $region32: #{tpu_custom_call.1} parent=1 // pred_region
      %v76 = vld [vmem:[%s1] sm:$0xff]
      %v77 = vld [vmem:[%s2] sm:$0xff]
      %vm78 = vcmask 80896
      %v79 = vsel %vm78, %v76, -inf
      %80 = vmax.xlane.f32.xlu0 %v79
      %v81 = vpop.xlane.xlu0 %80
      %v82 = vsub.f32 %v76, %v81
      %v83 = vmul.f32 %v82, 1.442695
      %v84 = vpow.pop %v83
      %v85 = vsel %vm78, %v84, 0.0
      %86 = vadd.xlane.f32.xlu0 %v85
      %v87 = vpop.xlane.xlu0 %86
      %v88 = vlog2.pop %v87
      %v89 = vmul.f32 %v88, 0.6931472
      %v90 = vlaneseq
      %v91 = vand.u32 %v90, 127
      %92 = vset.pattern.permute.xlu0 0
      %93 = vperm.xlu0 %92, %v77
      %v94 = vpop.permute.xlu0 %93
      %vm95 = vcmp.eq.s32.totalorder %v91, %v94
      %v96 = vsel %vm95, %v82, 0.0
      %v97 = vsel %vm78, %v96, 0.0
      %98 = vadd.xlane.f32.xlu0 %v97
      %v99 = vpop.xlane.xlu0 %98
      %v100 = vsub.f32 %v89, %v99
      %vm101 = vcmask 7168
      %v102 = vsel %vm101, %v100, 0.0
      %103 = vadd.xlane.f32.xlu0 %v102
      %v104 = vpop.xlane.xlu0 %103
      %v105 = vrot.slane %v104, 4
      %v106 = vadd.f32 %v104, %v105
      %v107 = vrot.slane %v106, 2
      %v108 = vadd.f32 %v106, %v107
      %v109 = vrot.slane %v108, 1
      %v110 = vadd.f32 %v108, %v109
      %s111 = vtos %v110
      %v112 = vld [vmem:[#allocation10] sm:$0x1]
      %vm113 = vcmp.eq.s32.totalorder %v91, 127
      %v114 = vstv %s111
      %v115 = vsel %vm113, %v114, 0.0
      %v116 = vadd.f32 %v112, %v115
      %117 = vst [vmem:[#allocation10] sm:$0x1] %v116
    $region33: #{tpu_custom_call.1} parent=1 // pred_fallthru
      _
    %s118 = sadd.s32 0, 0
    %s119 = smul.u32 %s118, 4
    %v120 = vld [vmem:[#allocation5] sm:$0xff]
    %v121 = vld [vmem:[#allocation5 + $0x8] sm:$0xff]
    %v122 = vld [vmem:[#allocation5 + $0x10] sm:$0xff]
    %v123 = vld [vmem:[#allocation5 + $0x18] sm:$0xff]
    %v124 = vld [vmem:[#allocation5 + $0x20] sm:$0xff]
    %v125 = vld [vmem:[#allocation5 + $0x28] sm:$0xff]
    %v126 = vld [vmem:[#allocation5 + $0x30] sm:$0xff]
    %v127 = vld [vmem:[#allocation5 + $0x38] sm:$0xff]
    %v128 = vld [vmem:[#allocation8] sm:$0xff]
    %v129 = vld [vmem:[#allocation8 + $0x8] sm:$0xff]
    %v130 = vld [vmem:[#allocation8 + $0x10] sm:$0xff]
    %v131 = vld [vmem:[#allocation8 + $0x18] sm:$0xff]
    %v132 = vld [vmem:[#allocation8 + $0x20] sm:$0xff]
    %v133 = vld [vmem:[#allocation8 + $0x28] sm:$0xff]
    %v134 = vld [vmem:[#allocation8 + $0x30] sm:$0xff]
    %v135 = vld [vmem:[#allocation8 + $0x38] sm:$0xff]
    %v136 = vsub.f32 %v120, %v128
    %v137 = vsub.f32 %v121, %v129
    %v138 = vsub.f32 %v122, %v130
    %v139 = vsub.f32 %v123, %v131
    %v140 = vsub.f32 %v124, %v132
    %v141 = vsub.f32 %v125, %v133
    %v142 = vsub.f32 %v126, %v134
    %v143 = vsub.f32 %v127, %v135
    %v144 = vmul.f32 %v136, %v136
    %v145 = vmul.f32 %v137, %v137
    %v146 = vmul.f32 %v138, %v138
    %v147 = vmul.f32 %v139, %v139
    %v148 = vmul.f32 %v140, %v140
    %v149 = vmul.f32 %v141, %v141
    %v150 = vmul.f32 %v142, %v142
    %v151 = vmul.f32 %v143, %v143
    %v152 = vld [vmem:[#allocation2] sm:$0xff]
    %v153 = vadd.f32 %v144, %v145
    %v154 = vadd.f32 %v153, %v146
    %v155 = vadd.f32 %v154, %v147
    %v156 = vadd.f32 %v155, %v148
    %v157 = vadd.f32 %v156, %v149
    %v158 = vadd.f32 %v157, %v150
    %v159 = vadd.f32 %v158, %v151
    %v160 = vadd.f32 %v152, %v159
    %161 = vst [vmem:[#allocation2] sm:$0xff] %v160
    %s162 = sld [smem:[#allocation4 + %s119]]
    %p163 = scmp.ge.s32.totalorder %s162, 0
    // Predicated region
    $region34: #{tpu_custom_call.1} parent=1 // pred_check
      %p164 = pneg %p163
    $region35: #{tpu_custom_call.1} parent=1 // pred_check_branch
      %166 = sbr.rel (%p164) target = $region37
    $region36: #{tpu_custom_call.1} parent=1 // pred_region
      %v167 = vld [vmem:[#allocation2] sm:$0xff]
      %168 = vadd.xlane.f32.xlu0 %v167
      %v169 = vpop.xlane.xlu0 %168
      %v170 = vrot.slane %v169, 4
      %v171 = vadd.f32 %v169, %v170
      %v172 = vrot.slane %v171, 2
      %v173 = vadd.f32 %v171, %v172
      %v174 = vrot.slane %v173, 1
      %v175 = vadd.f32 %v173, %v174
      %s176 = vtos %v175
      %v177 = vlaneseq
      %v178 = vand.u32 %v177, 127
      %v179 = vld [vmem:[#allocation10] sm:$0x1]
      %v180 = vstv %s162
      %vm181 = vcmp.eq.s32.totalorder %v178, %v180
      %v182 = vstv %s176
      %v183 = vsel %vm181, %v182, 0.0
      %v184 = vadd.f32 %v179, %v183
      %185 = vst [vmem:[#allocation10] sm:$0x1] %v184
      %186 = vst [vmem:[#allocation2] sm:$0xff] 0.0
    $region37: #{tpu_custom_call.1} parent=1 // pred_fallthru
      _
    %v187 = vld [vmem:[#allocation5 + $0x40] sm:$0xff]
    %v188 = vld [vmem:[#allocation5 + $0x48] sm:$0xff]
    %v189 = vld [vmem:[#allocation5 + $0x50] sm:$0xff]
    %v190 = vld [vmem:[#allocation5 + $0x58] sm:$0xff]
    %v191 = vld [vmem:[#allocation5 + $0x60] sm:$0xff]
    %v192 = vld [vmem:[#allocation5 + $0x68] sm:$0xff]
    %v193 = vld [vmem:[#allocation5 + $0x70] sm:$0xff]
    %v194 = vld [vmem:[#allocation5 + $0x78] sm:$0xff]
    %v195 = vld [vmem:[#allocation8 + $0x40] sm:$0xff]
    %v196 = vld [vmem:[#allocation8 + $0x48] sm:$0xff]
    %v197 = vld [vmem:[#allocation8 + $0x50] sm:$0xff]
    %v198 = vld [vmem:[#allocation8 + $0x58] sm:$0xff]
    %v199 = vld [vmem:[#allocation8 + $0x60] sm:$0xff]
    %v200 = vld [vmem:[#allocation8 + $0x68] sm:$0xff]
    %v201 = vld [vmem:[#allocation8 + $0x70] sm:$0xff]
    %v202 = vld [vmem:[#allocation8 + $0x78] sm:$0xff]
    %v203 = vsub.f32 %v187, %v195
    %v204 = vsub.f32 %v188, %v196
    %v205 = vsub.f32 %v189, %v197
    %v206 = vsub.f32 %v190, %v198
    %v207 = vsub.f32 %v191, %v199
    %v208 = vsub.f32 %v192, %v200
    %v209 = vsub.f32 %v193, %v201
    %v210 = vsub.f32 %v194, %v202
    %v211 = vmul.f32 %v203, %v203
    %v212 = vmul.f32 %v204, %v204
    %v213 = vmul.f32 %v205, %v205
    %v214 = vmul.f32 %v206, %v206
    %v215 = vmul.f32 %v207, %v207
    %v216 = vmul.f32 %v208, %v208
    %v217 = vmul.f32 %v209, %v209
    %v218 = vmul.f32 %v210, %v210
    %v219 = vld [vmem:[#allocation2] sm:$0xff]
    %v220 = vadd.f32 %v211, %v212
    %v221 = vadd.f32 %v220, %v213
    %v222 = vadd.f32 %v221, %v214
    %v223 = vadd.f32 %v222, %v215
    %v224 = vadd.f32 %v223, %v216
    %v225 = vadd.f32 %v224, %v217
    %v226 = vadd.f32 %v225, %v218
    %v227 = vadd.f32 %v219, %v226
    %228 = vst [vmem:[#allocation2] sm:$0xff] %v227
    %s229 = sadd.s32 %s119, 1
    %s230 = sld [smem:[#allocation4 + %s229]]
    %p231 = scmp.ge.s32.totalorder %s230, 0
    // Predicated region
    $region38: #{tpu_custom_call.1} parent=1 // pred_check
      %p232 = pneg %p231
    $region39: #{tpu_custom_call.1} parent=1 // pred_check_branch
      %234 = sbr.rel (%p232) target = $region41
    $region40: #{tpu_custom_call.1} parent=1 // pred_region
      %v235 = vld [vmem:[#allocation2] sm:$0xff]
      %236 = vadd.xlane.f32.xlu0 %v235
      %v237 = vpop.xlane.xlu0 %236
      %v238 = vrot.slane %v237, 4
      %v239 = vadd.f32 %v237, %v238
      %v240 = vrot.slane %v239, 2
      %v241 = vadd.f32 %v239, %v240
      %v242 = vrot.slane %v241, 1
      %v243 = vadd.f32 %v241, %v242
      %s244 = vtos %v243
      %v245 = vlaneseq
      %v246 = vand.u32 %v245, 127
      %v247 = vld [vmem:[#allocation10] sm:$0x1]
      %v248 = vstv %s230
      %vm249 = vcmp.eq.s32.totalorder %v246, %v248
      %v250 = vstv %s244
      %v251 = vsel %vm249, %v250, 0.0
      %v252 = vadd.f32 %v247, %v251
      %253 = vst [vmem:[#allocation10] sm:$0x1] %v252
      %254 = vst [vmem:[#allocation2] sm:$0xff] 0.0
    $region41: #{tpu_custom_call.1} parent=1 // pred_fallthru
      _
    %v255 = vld [vmem:[#allocation5 + $0x80] sm:$0xff]
    %v256 = vld [vmem:[#allocation5 + $0x88] sm:$0xff]
    %v257 = vld [vmem:[#allocation5 + $0x90] sm:$0xff]
    %v258 = vld [vmem:[#allocation5 + $0x98] sm:$0xff]
    %v259 = vld [vmem:[#allocation5 + $0xa0] sm:$0xff]
    %v260 = vld [vmem:[#allocation5 + $0xa8] sm:$0xff]
    %v261 = vld [vmem:[#allocation5 + $0xb0] sm:$0xff]
    %v262 = vld [vmem:[#allocation5 + $0xb8] sm:$0xff]
    %v263 = vld [vmem:[#allocation8 + $0x80] sm:$0xff]
    %v264 = vld [vmem:[#allocation8 + $0x88] sm:$0xff]
    %v265 = vld [vmem:[#allocation8 + $0x90] sm:$0xff]
    %v266 = vld [vmem:[#allocation8 + $0x98] sm:$0xff]
    %v267 = vld [vmem:[#allocation8 + $0xa0] sm:$0xff]
    %v268 = vld [vmem:[#allocation8 + $0xa8] sm:$0xff]
    %v269 = vld [vmem:[#allocation8 + $0xb0] sm:$0xff]
    %v270 = vld [vmem:[#allocation8 + $0xb8] sm:$0xff]
    %v271 = vsub.f32 %v255, %v263
    %v272 = vsub.f32 %v256, %v264
    %v273 = vsub.f32 %v257, %v265
    %v274 = vsub.f32 %v258, %v266
    %v275 = vsub.f32 %v259, %v267
    %v276 = vsub.f32 %v260, %v268
    %v277 = vsub.f32 %v261, %v269
    %v278 = vsub.f32 %v262, %v270
    %v279 = vmul.f32 %v271, %v271
    %v280 = vmul.f32 %v272, %v272
    %v281 = vmul.f32 %v273, %v273
    %v282 = vmul.f32 %v274, %v274
    %v283 = vmul.f32 %v275, %v275
    %v284 = vmul.f32 %v276, %v276
    %v285 = vmul.f32 %v277, %v277
    %v286 = vmul.f32 %v278, %v278
    %v287 = vld [vmem:[#allocation2] sm:$0xff]
    %v288 = vadd.f32 %v279, %v280
    %v289 = vadd.f32 %v288, %v281
    %v290 = vadd.f32 %v289, %v282
    %v291 = vadd.f32 %v290, %v283
    %v292 = vadd.f32 %v291, %v284
    %v293 = vadd.f32 %v292, %v285
    %v294 = vadd.f32 %v293, %v286
    %v295 = vadd.f32 %v287, %v294
    %296 = vst [vmem:[#allocation2] sm:$0xff] %v295
    %s297 = sadd.s32 %s119, 2
    %s298 = sld [smem:[#allocation4 + %s297]]
    %p299 = scmp.ge.s32.totalorder %s298, 0
    // Predicated region
    $region42: #{tpu_custom_call.1} parent=1 // pred_check
      %p300 = pneg %p299
    $region43: #{tpu_custom_call.1} parent=1 // pred_check_branch
      %302 = sbr.rel (%p300) target = $region45
    $region44: #{tpu_custom_call.1} parent=1 // pred_region
      %v303 = vld [vmem:[#allocation2] sm:$0xff]
      %304 = vadd.xlane.f32.xlu0 %v303
      %v305 = vpop.xlane.xlu0 %304
      %v306 = vrot.slane %v305, 4
      %v307 = vadd.f32 %v305, %v306
      %v308 = vrot.slane %v307, 2
      %v309 = vadd.f32 %v307, %v308
      %v310 = vrot.slane %v309, 1
      %v311 = vadd.f32 %v309, %v310
      %s312 = vtos %v311
      %v313 = vlaneseq
      %v314 = vand.u32 %v313, 127
      %v315 = vld [vmem:[#allocation10] sm:$0x1]
      %v316 = vstv %s298
      %vm317 = vcmp.eq.s32.totalorder %v314, %v316
      %v318 = vstv %s312
      %v319 = vsel %vm317, %v318, 0.0
      %v320 = vadd.f32 %v315, %v319
      %321 = vst [vmem:[#allocation10] sm:$0x1] %v320
      %322 = vst [vmem:[#allocation2] sm:$0xff] 0.0
    $region45: #{tpu_custom_call.1} parent=1 // pred_fallthru
      _
    %v323 = vld [vmem:[#allocation5 + $0xc0] sm:$0xff]
    %v324 = vld [vmem:[#allocation5 + $0xc8] sm:$0xff]
    %v325 = vld [vmem:[#allocation5 + $0xd0] sm:$0xff]
    %v326 = vld [vmem:[#allocation5 + $0xd8] sm:$0xff]
    %v327 = vld [vmem:[#allocation5 + $0xe0] sm:$0xff]
    %v328 = vld [vmem:[#allocation5 + $0xe8] sm:$0xff]
    %v329 = vld [vmem:[#allocation5 + $0xf0] sm:$0xff]
    %v330 = vld [vmem:[#allocation5 + $0xf8] sm:$0xff]
    %v331 = vld [vmem:[#allocation8 + $0xc0] sm:$0xff]
    %v332 = vld [vmem:[#allocation8 + $0xc8] sm:$0xff]
    %v333 = vld [vmem:[#allocation8 + $0xd0] sm:$0xff]
    %v334 = vld [vmem:[#allocation8 + $0xd8] sm:$0xff]
    %v335 = vld [vmem:[#allocation8 + $0xe0] sm:$0xff]
    %v336 = vld [vmem:[#allocation8 + $0xe8] sm:$0xff]
    %v337 = vld [vmem:[#allocation8 + $0xf0] sm:$0xff]
    %v338 = vld [vmem:[#allocation8 + $0xf8] sm:$0xff]
    %v339 = vsub.f32 %v323, %v331
    %v340 = vsub.f32 %v324, %v332
    %v341 = vsub.f32 %v325, %v333
    %v342 = vsub.f32 %v326, %v334
    %v343 = vsub.f32 %v327, %v335
    %v344 = vsub.f32 %v328, %v336
    %v345 = vsub.f32 %v329, %v337
    %v346 = vsub.f32 %v330, %v338
    %v347 = vmul.f32 %v339, %v339
    %v348 = vmul.f32 %v340, %v340
    %v349 = vmul.f32 %v341, %v341
    %v350 = vmul.f32 %v342, %v342
    %v351 = vmul.f32 %v343, %v343
    %v352 = vmul.f32 %v344, %v344
    %v353 = vmul.f32 %v345, %v345
    %v354 = vmul.f32 %v346, %v346
    %v355 = vld [vmem:[#allocation2] sm:$0xff]
    %v356 = vadd.f32 %v347, %v348
    %v357 = vadd.f32 %v356, %v349
    %v358 = vadd.f32 %v357, %v350
    %v359 = vadd.f32 %v358, %v351
    %v360 = vadd.f32 %v359, %v352
    %v361 = vadd.f32 %v360, %v353
    %v362 = vadd.f32 %v361, %v354
    %v363 = vadd.f32 %v355, %v362
    %364 = vst [vmem:[#allocation2] sm:$0xff] %v363
    %s365 = sadd.s32 %s119, 3
    %s366 = sld [smem:[#allocation4 + %s365]]
    %p367 = scmp.ge.s32.totalorder %s366, 0
    // Predicated region
    $region46: #{tpu_custom_call.1} parent=1 // pred_check
      %p368 = pneg %p367
    $region47: #{tpu_custom_call.1} parent=1 // pred_check_branch
      %370 = sbr.rel (%p368) target = $region49
    $region48: #{tpu_custom_call.1} parent=1 // pred_region
      %v371 = vld [vmem:[#allocation2] sm:$0xff]
      %372 = vadd.xlane.f32.xlu0 %v371
      %v373 = vpop.xlane.xlu0 %372
      %v374 = vrot.slane %v373, 4
      %v375 = vadd.f32 %v373, %v374
      %v376 = vrot.slane %v375, 2
      %v377 = vadd.f32 %v375, %v376
      %v378 = vrot.slane %v377, 1
      %v379 = vadd.f32 %v377, %v378
      %s380 = vtos %v379
      %v381 = vlaneseq
      %v382 = vand.u32 %v381, 127
      %v383 = vld [vmem:[#allocation10] sm:$0x1]
      %v384 = vstv %s366
      %vm385 = vcmp.eq.s32.totalorder %v382, %v384
      %v386 = vstv %s380
      %v387 = vsel %vm385, %v386, 0.0
      %v388 = vadd.f32 %v383, %v387
      %389 = vst [vmem:[#allocation10] sm:$0x1] %v388
      %390 = vst [vmem:[#allocation2] sm:$0xff] 0.0
    $region49: #{tpu_custom_call.1} parent=1 // pred_fallthru
      _
    // Predicated region
    $region50: #{tpu_custom_call.1} parent=1 // pred_check
      _
    $region51: #{tpu_custom_call.1} parent=1 // pred_check_branch
      %392 = sbr.rel (0) target = $region53
    $region52: #{tpu_custom_call.1} parent=1 // pred_region
      %s394 = ssub.s32 16, 16
      %395 = vsyncadd [#allocation7], %s394
      %s397 = sshll.u32 [#allocation10], 4
      %s398 = int_to_ptr.vmem [resolvable:$true] %s397
      %400 = dma.vmem_to_hbm [thread:$0]  %s398, 16, %s5, [#allocation7]
    $region53: #{tpu_custom_call.1} parent=1 // pred_fallthru
      _
    // Predicated region
    $region54: #{tpu_custom_call.1} parent=1 // pred_check
      _
    $region55: #{tpu_custom_call.1} parent=1 // pred_check_branch
      %402 = sbr.rel (0) target = $region57
    $region56: #{tpu_custom_call.1} parent=1 // pred_region
      %403 = dma.done [#allocation7], 16
    $region57: #{tpu_custom_call.1} parent=1 // pred_fallthru
      _
    %404 = vsyncpa [#allocation6], 1
    %405 = vsyncpa [#allocation9], 1
    %406 = vsyncpa [#allocation7], 1

</llo_original>
